<compile_context>
chip_gen: v6e
topology: v6e:2x2x1
jax: 0.10.0
libtpu: 0.0.40
codegen_flags: <defaults>
</compile_context>

<pallas_src>
import functools

import jax
import jax.numpy as jnp
from jax.experimental import pallas as pl
from jax.experimental.pallas import tpu as pltpu

S_IJ = -1.0  # constant in the PyTorch module


def _stable_softplus(x):
    # == (1 - S_IJ) * x / 2 + log(1 + exp(-x))  for S_IJ == -1, without overflow.
    return jnp.maximum(x, 0.0) + jnp.log1p(jnp.exp(-jnp.abs(x)))


def _pair_loss_reduce_kernel(yi_ref, yj_ref, out_ref, acc_ref, *,
                             n_rows, row_tile, tail_rows):
    """Grid = (d_blocks [parallel], n_blocks [arbitrary / reduction])."""
    kn = pl.program_id(1)
    last = pl.num_programs(1) - 1

    @pl.when(kn == 0)
    def _():
        acc_ref[...] = jnp.zeros_like(acc_ref)

    diff = yi_ref[...].astype(jnp.float32) - yj_ref[...].astype(jnp.float32)
    loss = _stable_softplus(diff)
    d_tile = loss.shape[1]

    def _accumulate(vals):
        # VPU-only partial accumulation onto an (8, d_tile) buffer; the single
        # cross-sublane (XLU) reduce happens only in the epilogue.
        acc_ref[...] += jnp.sum(vals.reshape(row_tile // 8, 8, d_tile), axis=0)

    if tail_rows:  # python-level gate: only emitted when n % row_tile != 0
        @pl.when(kn < last)
        def _():
            _accumulate(loss)           # fast path: no mask on interior blocks

        @pl.when(kn == last)
        def _():
            # Only the last block overhangs N; mask its padded rows so garbage
            # never contaminates the sum (tail_rows is a static constant).
            row_ids = jax.lax.broadcasted_iota(jnp.int32, loss.shape, 0)
            _accumulate(jnp.where(row_ids < tail_rows, loss, 0.0))
    else:
        _accumulate(loss)

    @pl.when(kn == last)
    def _():
        total = jnp.sum(acc_ref[...], axis=0, keepdims=True)
        out_ref[...] = (total * (1.0 / n_rows)).astype(out_ref.dtype)


def _round_up(x, m):
    return ((x + m - 1) // m) * m


def _vmem_capacity_bytes():
    try:
        return int(pltpu.get_tpu_info().vmem_capacity_bytes)
    except Exception:
        return 64 * 1024 * 1024  # conservative fallback (v7x per-TensorCore)


def _tensorcores_per_chip():
    try:
        kind = (getattr(jax.devices()[0], "device_kind", "") or "").lower()
        if "v7" in kind:
            return 2
    except Exception:
        pass
    return 1


def _pick_d_tile(d_pad, max_d_tile):
    """d_pad is always a multiple of 128, so a clean lane-aligned tile exists."""
    if d_pad <= max_d_tile:
        return d_pad
    for cand in (max_d_tile, 2048, 1024, 512, 256, 128):
        if cand <= max_d_tile and d_pad % cand == 0:
            return cand
    return 128


def pair_loss(pred_yi, pred_yj, *, row_tile=1024, max_d_tile=2048):
    """JAX/Pallas equivalent of Pair_loss.forward for 2-D (N, D) inputs."""
    pred_yi = jnp.asarray(pred_yi)
    pred_yj = jnp.asarray(pred_yj)
    assert pred_yi.shape == pred_yj.shape and pred_yi.ndim == 2
    n, d = pred_yi.shape

    if n <= 1:
        # len(pred_yi) == 1 branch: single-vreg elementwise work; Pallas launch
        # overhead would dwarf the compute, so let XLA fuse it.
        diff = (pred_yi - pred_yj).astype(jnp.float32)
        return _stable_softplus(diff)

    itemsize = jnp.dtype(pred_yi.dtype).itemsize
    sublane_mult = max(8, 32 // max(itemsize, 1))  # 8 for f32, 16 for bf16

    # Lane-align D: pad to a multiple of 128 so every block is lane-dense and
    # the DMA contiguous; padded columns are sliced off the output.
    # TODO(synk): for D < 128, repack (N, D) -> (N/g, g*D) for full lane use
    # instead of padding (up to 128/D x win on tiny-D problems).
    d_pad = _round_up(d, 128)
    if d_pad != d:
        pred_yi = jnp.pad(pred_yi, ((0, 0), (0, d_pad - d)))
        pred_yj = jnp.pad(pred_yj, ((0, 0), (0, d_pad - d)))

    dt = _pick_d_tile(d_pad, max_d_tile)
    d_blocks = d_pad // dt

    # Megacore (v7x): guarantee the "parallel" D axis has >= 2 blocks so both
    # TensorCores get work.  No-op on single-core chips (v5e/v6e).
    if _tensorcores_per_chip() >= 2 and d_blocks == 1 and dt >= 256 and dt % 256 == 0:
        dt //= 2
        d_blocks = 2

    rt = min(_round_up(row_tile, sublane_mult), _round_up(n, sublane_mult))

    # Keep 2 inputs x 2 pipeline buffers + scratch inside this chip's physical
    # VMEM (64 MiB on v7x, 128 MiB on v5e/v6e), with 20% headroom.
    vmem_cap = int(0.8 * _vmem_capacity_bytes())

    def _budget(rt_):
        return 2 * 2 * rt_ * dt * itemsize + (8 + 2 * 2) * dt * 4

    while _budget(rt) > vmem_cap and rt > sublane_mult:
        rt = max(sublane_mult, _round_up(rt // 2, sublane_mult))

    n_blocks = pl.cdiv(n, rt)
    tail_rows = n % rt  # 0 -> the masked code path is not emitted at all

    vmem_limit = int(min(max(32 * 1024 * 1024, int(_budget(rt) * 1.5)), vmem_cap))

    kernel = functools.partial(_pair_loss_reduce_kernel,
                               n_rows=n, row_tile=rt, tail_rows=tail_rows)

    out = pl.pallas_call(
        kernel,
        out_shape=jax.ShapeDtypeStruct((1, d_pad), jnp.float32),
        grid_spec=pltpu.PrefetchScalarGridSpec(
            num_scalar_prefetch=0,
            grid=(d_blocks, n_blocks),
            in_specs=[
                pl.BlockSpec((rt, dt), lambda jd, kn: (kn, jd)),
                pl.BlockSpec((rt, dt), lambda jd, kn: (kn, jd)),
            ],
            out_specs=pl.BlockSpec((1, dt), lambda jd, kn: (0, jd)),
            scratch_shapes=[pltpu.VMEM((8, dt), jnp.float32)],
        ),
        compiler_params=pltpu.CompilerParams(
            dimension_semantics=("parallel", "arbitrary"),
            vmem_limit_bytes=vmem_limit,
        ),
    )(pred_yi, pred_yj)

    # torch returns shape pred_yi.shape[1:] == (D,)
    return out.reshape(d_pad)[:d]


def _reference(pred_yi, pred_yj):
    """Pure-JAX reference replicating the PyTorch loop (original formula)."""
    pred_yi = jnp.asarray(pred_yi, jnp.float32)
    pred_yj = jnp.asarray(pred_yj, jnp.float32)
    diff = pred_yi - pred_yj
    loss = (1.0 - S_IJ) * diff / 2.0 + jnp.log(1.0 + jnp.exp(-diff))
    if pred_yi.shape[0] > 1:
        return jnp.sum(loss, axis=0) / pred_yi.shape[0]
    return loss


if __name__ == "__main__":
    key = jax.random.PRNGKey(0)
    ks = jax.random.split(key, 12)

    # Case A: N > 1, single row block (N rounded up to a multiple of 8).
    yi = jax.random.normal(ks[0], (40, 256), dtype=jnp.float32)
    yj = jax.random.normal(ks[1], (40, 256), dtype=jnp.float32)
    out = jax.block_until_ready(pair_loss(yi, yj))
    ref = _reference(yi, yj)
    assert out.shape == (256,)
    assert jnp.allclose(out, ref, atol=1e-5, rtol=1e-5), "case A mismatch"

    # Case B: multiple row blocks with a masked tail (300 rows, row_tile=128).
    yi_b = jax.random.normal(ks[2], (300, 384), dtype=jnp.float32)
    yj_b = jax.random.normal(ks[3], (300, 384), dtype=jnp.float32)
    out_b = jax.block_until_ready(pair_loss(yi_b, yj_b, row_tile=128))
    ref_b = _reference(yi_b, yj_b)
    assert out_b.shape == (384,)
    assert jnp.allclose(out_b, ref_b, atol=1e-5, rtol=1e-5), "case B mismatch"

    # Case C: bfloat16 inputs (halved HBM traffic), f32 accumulation inside.
    yi_c = jax.random.normal(ks[4], (320, 256), dtype=jnp.float32).astype(jnp.bfloat16)
    yj_c = jax.random.normal(ks[5], (320, 256), dtype=jnp.float32).astype(jnp.bfloat16)
    out_c = jax.block_until_ready(pair_loss(yi_c, yj_c))
    ref_c = _reference(yi_c.astype(jnp.float32), yj_c.astype(jnp.float32))
    assert out_c.shape == (256,)
    assert jnp.allclose(out_c, ref_c, atol=1e-5, rtol=1e-5), "case C mismatch"

    # Case D: N == 1 elementwise branch (pure-JAX fast path).
    yi1 = jax.random.normal(ks[6], (1, 128), dtype=jnp.float32)
    yj1 = jax.random.normal(ks[7], (1, 128), dtype=jnp.float32)
    out1 = jax.block_until_ready(pair_loss(yi1, yj1))
    ref1 = _reference(yi1, yj1)
    assert out1.shape == (1, 128)
    assert jnp.allclose(out1, ref1, atol=1e-5, rtol=1e-5), "case D mismatch"

    # Case E: D not a multiple of 128 (padded to 256, sliced back) + tail rows.
    yi_e = jax.random.normal(ks[8], (50, 200), dtype=jnp.float32)
    yj_e = jax.random.normal(ks[9], (50, 200), dtype=jnp.float32)
    out_e = jax.block_until_ready(pair_loss(yi_e, yj_e))
    ref_e = _reference(yi_e, yj_e)
    assert out_e.shape == (200,)
    assert jnp.allclose(out_e, ref_e, atol=1e-5, rtol=1e-5), "case E mismatch"

    # Case F: bf16 with multiple row blocks and a masked tail (70 rows, rt=32).
    yi_f = jax.random.normal(ks[10], (70, 256), dtype=jnp.float32).astype(jnp.bfloat16)
    yj_f = jax.random.normal(ks[11], (70, 256), dtype=jnp.float32).astype(jnp.bfloat16)
    out_f = jax.block_until_ready(pair_loss(yi_f, yj_f, row_tile=32))
    ref_f = _reference(yi_f.astype(jnp.float32), yj_f.astype(jnp.float32))
    assert out_f.shape == (256,)
    assert jnp.allclose(out_f, ref_f, atol=1e-5, rtol=1e-5), "case F mismatch"

    print("KERNEL_OK")
</pallas_src>

<mosaic_0001>
module attributes {stable_mosaic.version = 11 : i64} {
  func.func @_pair_loss_reduce_kernel(%arg0: i32, %arg1: i32, %arg2: memref<40x256xf32, #tpu.memory_space<vmem>>, %arg3: memref<40x256xf32, #tpu.memory_space<vmem>>, %arg4: memref<1x256xf32, #tpu.memory_space<vmem>>, %arg5: memref<8x256xf32, #tpu.memory_space<vmem>>) attributes {dimension_semantics = [#tpu.dimension_semantics<parallel>, #tpu.dimension_semantics<arbitrary>], iteration_bounds = array<i64: 1, 1>, scalar_prefetch = 0 : i64, scratch_operands = 1 : i64, tpu.core_type = #tpu.core_type<tc>, window_params = [{transform_indices = @transform_0, window_bounds = array<i64: 40, 256>}, {transform_indices = @transform_1, window_bounds = array<i64: 40, 256>}, {transform_indices = @transform_2, window_bounds = array<i64: 1, 256>}]} {
    %c0_i32 = arith.constant 0 : i32
    %0 = arith.cmpi eq, %arg1, %c0_i32 : i32
    %1 = arith.extui %0 : i1 to i32
    %c0_i32_0 = arith.constant 0 : i32
    %2 = arith.cmpi ne, %1, %c0_i32_0 : i32
    scf.if %2 {
      %cst_12 = arith.constant 0.000000e+00 : f32
      %22 = vector.broadcast %cst_12 : f32 to vector<8x256xf32>
      %c0_13 = arith.constant 0 : index
      %c0_14 = arith.constant 0 : index
      %23 = vector.load %arg5[%c0_13, %c0_14] : memref<8x256xf32, #tpu.memory_space<vmem>>, vector<8x256xf32>
      tpu.vector_store %arg5[%c0_13, %c0_14], %22 {strides = array<i32>} : memref<8x256xf32, #tpu.memory_space<vmem>>, vector<8x256xf32>,
    } else {
    }
    %c0 = arith.constant 0 : index
    %c0_1 = arith.constant 0 : index
    %3 = vector.load %arg2[%c0, %c0_1] : memref<40x256xf32, #tpu.memory_space<vmem>>, vector<40x256xf32>
    %c0_2 = arith.constant 0 : index
    %c0_3 = arith.constant 0 : index
    %4 = vector.load %arg3[%c0_2, %c0_3] : memref<40x256xf32, #tpu.memory_space<vmem>>, vector<40x256xf32>
    %5 = arith.subf %3, %4 : vector<40x256xf32>
    %cst = arith.constant 0.000000e+00 : f32
    %6 = vector.broadcast %cst : f32 to vector<40x256xf32>
    %7 = arith.maximumf %5, %6 : vector<40x256xf32>
    %8 = math.absf %5 : vector<40x256xf32>
    %cst_4 = arith.constant 0.000000e+00 : f32
    %9 = vector.broadcast %cst_4 : f32 to vector<40x256xf32>
    %10 = arith.subf %9, %8 : vector<40x256xf32>
    %11 = math.exp %10 : vector<40x256xf32>
    %12 = math.log1p %11 : vector<40x256xf32>
    %13 = arith.addf %7, %12 : vector<40x256xf32>
    %c0_5 = arith.constant 0 : index
    %c0_6 = arith.constant 0 : index
    %14 = vector.load %arg5[%c0_5, %c0_6] : memref<8x256xf32, #tpu.memory_space<vmem>>, vector<8x256xf32>
    %15 = vector.shape_cast %13 : vector<40x256xf32> to vector<5x8x256xf32>
    %cst_7 = arith.constant dense<0.000000e+00> : vector<8x256xf32>
    %16 = vector.multi_reduction <add>, %15, %cst_7 [0] : vector<5x8x256xf32> to vector<8x256xf32>
    %17 = arith.addf %14, %16 : vector<8x256xf32>
    %c0_8 = arith.constant 0 : index
    %c0_9 = arith.constant 0 : index
    %18 = vector.load %arg5[%c0_8, %c0_9] : memref<8x256xf32, #tpu.memory_space<vmem>>, vector<8x256xf32>
    tpu.vector_store %arg5[%c0_8, %c0_9], %17 {strides = array<i32>} : memref<8x256xf32, #tpu.memory_space<vmem>>, vector<8x256xf32>,
    %c0_i32_10 = arith.constant 0 : i32
    %19 = arith.cmpi eq, %arg1, %c0_i32_10 : i32
    %20 = arith.extui %19 : i1 to i32
    %c0_i32_11 = arith.constant 0 : i32
    %21 = arith.cmpi ne, %20, %c0_i32_11 : i32
    scf.if %21 {
      %c0_12 = arith.constant 0 : index
      %c0_13 = arith.constant 0 : index
      %22 = vector.load %arg5[%c0_12, %c0_13] : memref<8x256xf32, #tpu.memory_space<vmem>>, vector<8x256xf32>
      %cst_14 = arith.constant dense<0.000000e+00> : vector<256xf32>
      %23 = vector.multi_reduction <add>, %22, %cst_14 [0] : vector<8x256xf32> to vector<256xf32>
      %24 = vector.shape_cast %23 : vector<256xf32> to vector<1x256xf32>
      %cst_15 = arith.constant 2.500000e-02 : f32
      %25 = vector.broadcast %cst_15 : f32 to vector<1x256xf32>
      %26 = arith.mulf %24, %25 : vector<1x256xf32>
      %c0_16 = arith.constant 0 : index
      %c0_17 = arith.constant 0 : index
      %27 = vector.load %arg4[%c0_16, %c0_17] : memref<1x256xf32, #tpu.memory_space<vmem>>, vector<1x256xf32>
      tpu.vector_store %arg4[%c0_16, %c0_17], %26 {strides = array<i32>} : memref<1x256xf32, #tpu.memory_space<vmem>>, vector<1x256xf32>,
    } else {
    }
    return
  }
  func.func @transform_0(%arg0: i32, %arg1: i32) -> (i32, i32) {
    %c0_i32 = arith.constant 0 : i32
    return %arg1, %arg0 : i32, i32
  }
  func.func @transform_1(%arg0: i32, %arg1: i32) -> (i32, i32) {
    %c0_i32 = arith.constant 0 : i32
    return %arg1, %arg0 : i32, i32
  }
  func.func @transform_2(%arg0: i32, %arg1: i32) -> (i32, i32) {
    %c0_i32 = arith.constant 0 : i32
    %c0_i32_0 = arith.constant 0 : i32
    return %c0_i32, %arg0 : i32, i32
  }
}

</mosaic_0001>

<llo_original>
// kernel: tpu_custom_call.1
$region0: #{tpu_custom_call.1}
  #allocation0 [shape = 'u32[]', space=smem, size = 0x4, offset = 0x4, fixed_abs, tag = 'smem constant byte address 0x4 - core index']
  #allocation1 [shape = 'u32[144,128]{1,0:T(1,128)}', space=vmem, size = 0x12000, scoped, tag = 'internal scratch']
  #allocation2 [shape = 'f32[8,256]{1,0:T(8,128)}', space=vmem, size = 0x2000, scoped, tag = 'scratch operand']
  %s0 = inlined_call_operand.hbm [shape: f32[40,256], index: 0, kind: input, shape index: {}]
  %s1 = inlined_call_operand.hbm [shape: f32[40,256], index: 1, kind: input, shape index: {}]
  %s2 = inlined_call_operand.hbm [shape: f32[1,256], index: 2, kind: output, shape index: {}]
  %s3 = sld [smem:[#allocation0]]
  $region34: #{tpu_custom_call.1} parent=0
    _
  %s5 = ssub.s32 1, %s3
  %s6 = scalar_select 0, %s5, %s3
  $region1: #{tpu_custom_call.1} parent=0
    #allocation3 [shape = 'u8[40960]{0}', space=vmem, size = 0xa000, scoped, tag = 'input window, operand 0, single buffered']
    #allocation4 [shape = 's32[1]{0}', space=sflag, size = 0x4, scoped, tag = 'scoped memory for tpu_custom_call.1']
    #allocation5 [shape = 's32[1]{0}', space=sflag, size = 0x4, scoped, tag = 'scoped memory for tpu_custom_call.1']
    #allocation6 [shape = 'u8[40960]{0}', space=vmem, size = 0xa000, scoped, tag = 'input window, operand 1, single buffered']
    #allocation7 [shape = 's32[1]{0}', space=sflag, size = 0x4, scoped, tag = 'scoped memory for tpu_custom_call.1']
    #allocation8 [shape = 'u8[1024]{0}', space=vmem, size = 0x400, scoped, tag = 'output window, operand 0, single buffered']
    %7 = vsyncpa [#allocation4], 0
    %8 = vsyncpa [#allocation7], 0
    %9 = vsyncpa [#allocation5], 0
    // Predicated region
    $region2: #{tpu_custom_call.1} parent=1 // pred_check
      _
    $region3: #{tpu_custom_call.1} parent=1 // pred_check_branch
      %11 = sbr.rel (0) target = $region5
    $region4: #{tpu_custom_call.1} parent=1 // pred_region
      %s13 = ssub.s32 1280, 1280
      %14 = vsyncadd [#allocation4], %s13
      %s15 = sshll.u32 [#allocation3], 4
      %s16 = int_to_ptr.vmem [resolvable:$true] %s15
      %21 = dma.hbm_to_vmem [thread:$0]  %s0, 1280, %s16, [#allocation4], 256, 256, 16
    $region5: #{tpu_custom_call.1} parent=1 // pred_fallthru
      _
    // Predicated region
    $region6: #{tpu_custom_call.1} parent=1 // pred_check
      _
    $region7: #{tpu_custom_call.1} parent=1 // pred_check_branch
      %23 = sbr.rel (0) target = $region9
    $region8: #{tpu_custom_call.1} parent=1 // pred_region
      %s25 = ssub.s32 1280, 1280
      %26 = vsyncadd [#allocation7], %s25
      %s27 = sshll.u32 [#allocation6], 4
      %s28 = int_to_ptr.vmem [resolvable:$true] %s27
      %33 = dma.hbm_to_vmem [thread:$0]  %s1, 1280, %s28, [#allocation7], 256, 256, 16
    $region9: #{tpu_custom_call.1} parent=1 // pred_fallthru
      _
    // Predicated region
    $region10: #{tpu_custom_call.1} parent=1 // pred_check
      _
    $region11: #{tpu_custom_call.1} parent=1 // pred_check_branch
      %35 = sbr.rel (0) target = $region13
    $region12: #{tpu_custom_call.1} parent=1 // pred_region
      %36 = dma.done [#allocation4], 1280
    $region13: #{tpu_custom_call.1} parent=1 // pred_fallthru
      _
    // Predicated region
    $region14: #{tpu_custom_call.1} parent=1 // pred_check
      _
    $region15: #{tpu_custom_call.1} parent=1 // pred_check_branch
      %38 = sbr.rel (0) target = $region17
    $region16: #{tpu_custom_call.1} parent=1 // pred_region
      %39 = dma.done [#allocation7], 1280
    $region17: #{tpu_custom_call.1} parent=1 // pred_fallthru
      _
    %p40 = scmp.eq.s32.totalorder 0, 0
    // Predicated region
    $region18: #{tpu_custom_call.1} parent=1 // pred_check
      %p41 = pneg %p40
    $region19: #{tpu_custom_call.1} parent=1 // pred_check_branch
      %43 = sbr.rel (%p41) target = $region21
    $region20: #{tpu_custom_call.1} parent=1 // pred_region
      %44 = vst [vmem:[#allocation2] sm:$0xff] 0.0
      %45 = vst [vmem:[#allocation2 + $0x8] sm:$0xff] 0.0
    $region21: #{tpu_custom_call.1} parent=1 // pred_fallthru
      _
    %v46 = vld [vmem:[#allocation3] sm:$0xff]
    %v47 = vld [vmem:[#allocation3 + $0x8] sm:$0xff]
    %v48 = vld [vmem:[#allocation3 + $0x10] sm:$0xff]
    %v49 = vld [vmem:[#allocation3 + $0x18] sm:$0xff]
    %v50 = vld [vmem:[#allocation3 + $0x20] sm:$0xff]
    %v51 = vld [vmem:[#allocation3 + $0x28] sm:$0xff]
    %v52 = vld [vmem:[#allocation3 + $0x30] sm:$0xff]
    %v53 = vld [vmem:[#allocation3 + $0x38] sm:$0xff]
    %v54 = vld [vmem:[#allocation3 + $0x40] sm:$0xff]
    %v55 = vld [vmem:[#allocation3 + $0x48] sm:$0xff]
    %v56 = vld [vmem:[#allocation6] sm:$0xff]
    %v57 = vld [vmem:[#allocation6 + $0x8] sm:$0xff]
    %v58 = vld [vmem:[#allocation6 + $0x10] sm:$0xff]
    %v59 = vld [vmem:[#allocation6 + $0x18] sm:$0xff]
    %v60 = vld [vmem:[#allocation6 + $0x20] sm:$0xff]
    %v61 = vld [vmem:[#allocation6 + $0x28] sm:$0xff]
    %v62 = vld [vmem:[#allocation6 + $0x30] sm:$0xff]
    %v63 = vld [vmem:[#allocation6 + $0x38] sm:$0xff]
    %v64 = vld [vmem:[#allocation6 + $0x40] sm:$0xff]
    %v65 = vld [vmem:[#allocation6 + $0x48] sm:$0xff]
    %v66 = vsub.f32 %v46, %v56
    %v67 = vsub.f32 %v47, %v57
    %v68 = vsub.f32 %v48, %v58
    %v69 = vsub.f32 %v49, %v59
    %v70 = vsub.f32 %v50, %v60
    %v71 = vsub.f32 %v51, %v61
    %v72 = vsub.f32 %v52, %v62
    %v73 = vsub.f32 %v53, %v63
    %v74 = vsub.f32 %v54, %v64
    %v75 = vsub.f32 %v55, %v65
    %v76 = vmax.f32 %v66, 0.0
    %v77 = vmax.f32 %v67, 0.0
    %v78 = vmax.f32 %v68, 0.0
    %v79 = vmax.f32 %v69, 0.0
    %v80 = vmax.f32 %v70, 0.0
    %v81 = vmax.f32 %v71, 0.0
    %v82 = vmax.f32 %v72, 0.0
    %v83 = vmax.f32 %v73, 0.0
    %v84 = vmax.f32 %v74, 0.0
    %v85 = vmax.f32 %v75, 0.0
    %v86 = vand.u32 2147483647, %v66
    %v87 = vand.u32 2147483647, %v67
    %v88 = vand.u32 2147483647, %v68
    %v89 = vand.u32 2147483647, %v69
    %v90 = vand.u32 2147483647, %v70
    %v91 = vand.u32 2147483647, %v71
    %v92 = vand.u32 2147483647, %v72
    %v93 = vand.u32 2147483647, %v73
    %v94 = vand.u32 2147483647, %v74
    %v95 = vand.u32 2147483647, %v75
    %v96 = vsub.f32 0.0, %v86
    %v97 = vsub.f32 0.0, %v87
    %v98 = vsub.f32 0.0, %v88
    %v99 = vsub.f32 0.0, %v89
    %v100 = vsub.f32 0.0, %v90
    %v101 = vsub.f32 0.0, %v91
    %v102 = vsub.f32 0.0, %v92
    %v103 = vsub.f32 0.0, %v93
    %v104 = vsub.f32 0.0, %v94
    %v105 = vsub.f32 0.0, %v95
    %v106 = vmul.f32 %v96, 1.442695
    %v107 = vpow.pop %v106
    %v108 = vmul.f32 %v97, 1.442695
    %v109 = vpow.pop %v108
    %v110 = vmul.f32 %v98, 1.442695
    %v111 = vpow.pop %v110
    %v112 = vmul.f32 %v99, 1.442695
    %v113 = vpow.pop %v112
    %v114 = vmul.f32 %v100, 1.442695
    %v115 = vpow.pop %v114
    %v116 = vmul.f32 %v101, 1.442695
    %v117 = vpow.pop %v116
    %v118 = vmul.f32 %v102, 1.442695
    %v119 = vpow.pop %v118
    %v120 = vmul.f32 %v103, 1.442695
    %v121 = vpow.pop %v120
    %v122 = vmul.f32 %v104, 1.442695
    %v123 = vpow.pop %v122
    %v124 = vmul.f32 %v105, 1.442695
    %v125 = vpow.pop %v124
    %v126 = vadd.f32 %v107, 1.0
    %v127 = vlog2.pop %v126
    %v128 = vmul.f32 %v127, 0.6931472
    %v129 = vmul.f32 -0.5, %v107
    %v130 = vadd.f32 %v129, 1.0
    %v131 = vmul.f32 %v130, %v107
    %v132 = vand.u32 2147483647, %v107
    %vm133 = vcmp.lt.f32.partialorder %v132, 0.0004427343
    %v134 = vsel %vm133, %v131, %v128
    %v135 = vadd.f32 %v109, 1.0
    %v136 = vlog2.pop %v135
    %v137 = vmul.f32 %v136, 0.6931472
    %v138 = vmul.f32 -0.5, %v109
    %v139 = vadd.f32 %v138, 1.0
    %v140 = vmul.f32 %v139, %v109
    %v141 = vand.u32 2147483647, %v109
    %vm142 = vcmp.lt.f32.partialorder %v141, 0.0004427343
    %v143 = vsel %vm142, %v140, %v137
    %v144 = vadd.f32 %v111, 1.0
    %v145 = vlog2.pop %v144
    %v146 = vmul.f32 %v145, 0.6931472
    %v147 = vmul.f32 -0.5, %v111
    %v148 = vadd.f32 %v147, 1.0
    %v149 = vmul.f32 %v148, %v111
    %v150 = vand.u32 2147483647, %v111
    %vm151 = vcmp.lt.f32.partialorder %v150, 0.0004427343
    %v152 = vsel %vm151, %v149, %v146
    %v153 = vadd.f32 %v113, 1.0
    %v154 = vlog2.pop %v153
    %v155 = vmul.f32 %v154, 0.6931472
    %v156 = vmul.f32 -0.5, %v113
    %v157 = vadd.f32 %v156, 1.0
    %v158 = vmul.f32 %v157, %v113
    %v159 = vand.u32 2147483647, %v113
    %vm160 = vcmp.lt.f32.partialorder %v159, 0.0004427343
    %v161 = vsel %vm160, %v158, %v155
    %v162 = vadd.f32 %v115, 1.0
    %v163 = vlog2.pop %v162
    %v164 = vmul.f32 %v163, 0.6931472
    %v165 = vmul.f32 -0.5, %v115
    %v166 = vadd.f32 %v165, 1.0
    %v167 = vmul.f32 %v166, %v115
    %v168 = vand.u32 2147483647, %v115
    %vm169 = vcmp.lt.f32.partialorder %v168, 0.0004427343
    %v170 = vsel %vm169, %v167, %v164
    %v171 = vadd.f32 %v117, 1.0
    %v172 = vlog2.pop %v171
    %v173 = vmul.f32 %v172, 0.6931472
    %v174 = vmul.f32 -0.5, %v117
    %v175 = vadd.f32 %v174, 1.0
    %v176 = vmul.f32 %v175, %v117
    %v177 = vand.u32 2147483647, %v117
    %vm178 = vcmp.lt.f32.partialorder %v177, 0.0004427343
    %v179 = vsel %vm178, %v176, %v173
    %v180 = vadd.f32 %v119, 1.0
    %v181 = vlog2.pop %v180
    %v182 = vmul.f32 %v181, 0.6931472
    %v183 = vmul.f32 -0.5, %v119
    %v184 = vadd.f32 %v183, 1.0
    %v185 = vmul.f32 %v184, %v119
    %v186 = vand.u32 2147483647, %v119
    %vm187 = vcmp.lt.f32.partialorder %v186, 0.0004427343
    %v188 = vsel %vm187, %v185, %v182
    %v189 = vadd.f32 %v121, 1.0
    %v190 = vlog2.pop %v189
    %v191 = vmul.f32 %v190, 0.6931472
    %v192 = vmul.f32 -0.5, %v121
    %v193 = vadd.f32 %v192, 1.0
    %v194 = vmul.f32 %v193, %v121
    %v195 = vand.u32 2147483647, %v121
    %vm196 = vcmp.lt.f32.partialorder %v195, 0.0004427343
    %v197 = vsel %vm196, %v194, %v191
    %v198 = vadd.f32 %v123, 1.0
    %v199 = vlog2.pop %v198
    %v200 = vmul.f32 %v199, 0.6931472
    %v201 = vmul.f32 -0.5, %v123
    %v202 = vadd.f32 %v201, 1.0
    %v203 = vmul.f32 %v202, %v123
    %v204 = vand.u32 2147483647, %v123
    %vm205 = vcmp.lt.f32.partialorder %v204, 0.0004427343
    %v206 = vsel %vm205, %v203, %v200
    %v207 = vadd.f32 %v125, 1.0
    %v208 = vlog2.pop %v207
    %v209 = vmul.f32 %v208, 0.6931472
    %v210 = vmul.f32 -0.5, %v125
    %v211 = vadd.f32 %v210, 1.0
    %v212 = vmul.f32 %v211, %v125
    %v213 = vand.u32 2147483647, %v125
    %vm214 = vcmp.lt.f32.partialorder %v213, 0.0004427343
    %v215 = vsel %vm214, %v212, %v209
    %v216 = vadd.f32 %v76, %v134
    %v217 = vadd.f32 %v77, %v143
    %v218 = vadd.f32 %v78, %v152
    %v219 = vadd.f32 %v79, %v161
    %v220 = vadd.f32 %v80, %v170
    %v221 = vadd.f32 %v81, %v179
    %v222 = vadd.f32 %v82, %v188
    %v223 = vadd.f32 %v83, %v197
    %v224 = vadd.f32 %v84, %v206
    %v225 = vadd.f32 %v85, %v215
    %v226 = vld [vmem:[#allocation2] sm:$0xff]
    %v227 = vld [vmem:[#allocation2 + $0x8] sm:$0xff]
    %v228 = vadd.f32 %v216, %v218
    %v229 = vadd.f32 %v228, %v220
    %v230 = vadd.f32 %v229, %v222
    %v231 = vadd.f32 %v230, %v224
    %v232 = vadd.f32 %v217, %v219
    %v233 = vadd.f32 %v232, %v221
    %v234 = vadd.f32 %v233, %v223
    %v235 = vadd.f32 %v234, %v225
    %v236 = vadd.f32 %v226, %v231
    %v237 = vadd.f32 %v227, %v235
    %238 = vst [vmem:[#allocation2] sm:$0xff] %v236
    %239 = vst [vmem:[#allocation2 + $0x8] sm:$0xff] %v237
    // Predicated region
    $region22: #{tpu_custom_call.1} parent=1 // pred_check
      %p240 = pneg %p40
    $region23: #{tpu_custom_call.1} parent=1 // pred_check_branch
      %242 = sbr.rel (%p240) target = $region25
    $region24: #{tpu_custom_call.1} parent=1 // pred_region
      %v243 = vld [vmem:[#allocation2] sm:$0xff]
      %v244 = vld [vmem:[#allocation2 + $0x8] sm:$0xff]
      %v245 = vrot.slane %v243, 4
      %v246 = vadd.f32 %v243, %v245
      %v247 = vrot.slane %v246, 2
      %v248 = vadd.f32 %v246, %v247
      %v249 = vrot.slane %v248, 1
      %v250 = vadd.f32 %v248, %v249
      %v251 = vrot.slane %v244, 4
      %v252 = vadd.f32 %v244, %v251
      %v253 = vrot.slane %v252, 2
      %v254 = vadd.f32 %v252, %v253
      %v255 = vrot.slane %v254, 1
      %v256 = vadd.f32 %v254, %v255
      %v257 = vmul.f32 %v250, 0.025
      %v258 = vmul.f32 %v256, 0.025
      %v261 = vcombine.low %v257, %v258
      %v263 = vunpack.c.l.s4 1966171168
      %v264 = vunpack.c.0.s8 %v263
      %v265 = vlaneseq
      %v266 = vshrl.u32 %v265, 7
      %v267 = vsub.s32 %v264, %v266
      %v268 = vrot.slane %v261, %v267
      %v270 = vunpack.c.l.s4 1966171168
      %v271 = vunpack.c.0.s8 %v270
      %v272 = vlaneseq
      %v273 = vshrl.u32 %v272, 7
      %v274 = vsub.s32 %v271, %v273
      %v275 = vrot.slane %v268, %v274
      %v277 = vlaneseq
      %vm278 = vcmp.ge.s32.totalorder %v277, 0
      %vm279 = vcmp.lt.s32.totalorder %v277, 256
      %vm280 = vmand %vm278, %vm279
      %281 = vst.msk [vmem:[#allocation8] sm:$0x3] %vm280, %v275
    $region25: #{tpu_custom_call.1} parent=1 // pred_fallthru
      _
    // Predicated region
    $region26: #{tpu_custom_call.1} parent=1 // pred_check
      _
    $region27: #{tpu_custom_call.1} parent=1 // pred_check_branch
      %283 = sbr.rel (0) target = $region29
    $region28: #{tpu_custom_call.1} parent=1 // pred_region
      %s285 = ssub.s32 32, 32
      %286 = vsyncadd [#allocation5], %s285
      %s288 = sshll.u32 [#allocation8], 4
      %s289 = int_to_ptr.vmem [resolvable:$true] %s288
      %291 = dma.vmem_to_hbm [thread:$0]  %s289, 32, %s2, [#allocation5]
    $region29: #{tpu_custom_call.1} parent=1 // pred_fallthru
      _
    // Predicated region
    $region30: #{tpu_custom_call.1} parent=1 // pred_check
      _
    $region31: #{tpu_custom_call.1} parent=1 // pred_check_branch
      %293 = sbr.rel (0) target = $region33
    $region32: #{tpu_custom_call.1} parent=1 // pred_region
      %294 = dma.done [#allocation5], 32
    $region33: #{tpu_custom_call.1} parent=1 // pred_fallthru
      _
    %295 = vsyncpa [#allocation4], 1
    %296 = vsyncpa [#allocation7], 1
    %297 = vsyncpa [#allocation5], 1

</llo_original>
